<compile_context>
chip_gen: v5e
topology: v5e:2x2
jax: 0.10.0
libtpu: 0.0.40
codegen_flags: <defaults>
</compile_context>

<pallas_src>
import math

import numpy as np
import jax
import jax.numpy as jnp
from jax.experimental import pallas as pl
from jax.experimental.pallas import tpu as pltpu


# ----------------------------- in-kernel helpers -----------------------------

def _relu(x):
    return jnp.maximum(x, 0.0)


def _leaky(x, slope=0.01):  # torch nn.LeakyReLU default negative_slope
    return jnp.where(x > 0, x, slope * x)


# ------------------------------ weight-slab layout ----------------------------

def _weight_layout(num_features, hidden_dim, num_gc_layers, cluster_emb):
    """Static layout of all weights in one [rows, slab_w] slab (stored [in,out])."""
    emb = hidden_dim * num_gc_layers
    half = emb // 2
    entries = []
    for l in range(num_gc_layers):
        in_f = num_features if l == 0 else hidden_dim
        entries.append((f"gin{l}_l1", in_f, hidden_dim))
        entries.append((f"gin{l}_l2", hidden_dim, hidden_dim))
    entries += [
        ("proj_l1", emb, emb),
        ("proj_l2", emb, emb),
        ("ff_l1sc", emb, 2 * emb),                 # FF first Linear + shortcut fused
        ("ff_l2", emb, emb),
        ("ff_l3", emb, emb),
        ("cl_l1sc", emb, half + cluster_emb),      # Cluster first Linear + shortcut fused
        ("cl_l2", half, cluster_emb),
    ]
    layout = {}
    row = 0
    max_out = 0
    for brow, (name, in_f, out_f) in enumerate(entries):
        layout[name] = (row, in_f, out_f, brow)
        row += ((in_f + 7) // 8) * 8               # sublane-align every block
        max_out = max(max_out, out_f)
    slab_w = ((max_out + 127) // 128) * 128        # lane-dense slab width
    w_rows = ((row + 7) // 8) * 8
    b_rows = ((len(entries) + 7) // 8) * 8
    return layout, w_rows, b_rows, slab_w


# ------------------------------ fused kernel ----------------------------------

def _make_encoder_kernel(layout, num_gc_layers, hidden_dim, cluster_emb, emb):
    half = emb // 2

    def kernel(a_ref, x_ref, p_ref, w_ref, b_ref, out_ref):
        # static-slice unpack of the packed slabs (zero-cost views of the refs)
        def getw(name):
            row, in_f, out_f, _ = layout[name]
            return w_ref[row:row + in_f, :out_f]          # [in, out]

        def getb(name):
            _, _, out_f, brow = layout[name]
            return b_ref[brow:brow + 1, :out_f]           # [1, out]

        def lin(x, name):
            return jnp.dot(x, getw(name),
                           preferred_element_type=jnp.float32) + getb(name)

        a = a_ref[...]            # [N, N]   (A + I)
        p = p_ref[...]            # [G, N]   graph pooling matrix
        h = x_ref[...]            # [N, F]

        prow, _, pout, _ = layout["proj_l1"]
        y = None
        for l in range(num_gc_layers):
            # GINConv MLP: Linear -> ReLU -> Linear, then ReLU, then BatchNorm
            agg = jnp.dot(a, h, preferred_element_type=jnp.float32)
            hh = _relu(lin(agg, f"gin{l}_l1"))
            hh = _relu(lin(hh, f"gin{l}_l2"))
            # BatchNorm1d (train-mode batch stats, gamma=1, beta=0), two-pass var
            mean = jnp.mean(hh, axis=0, keepdims=True)
            cent = hh - mean
            var = jnp.mean(cent * cent, axis=0, keepdims=True)
            h = cent * jax.lax.rsqrt(var + 1e-5)
            # global_add_pool of this layer feeds ONLY the first projection
            # Linear -> accumulate (P@h_l) @ W1[l-block] instead of concat.
            pooled = jnp.dot(p, h, preferred_element_type=jnp.float32)   # [G, hid]
            w1_blk = w_ref[prow + l * hidden_dim: prow + (l + 1) * hidden_dim,
                           :pout]
            part = jnp.dot(pooled, w1_blk, preferred_element_type=jnp.float32)
            y = part if y is None else y + part
        y = y + getb("proj_l1")

        # projection head: Linear -> LeakyReLU -> Linear
        y = lin(_leaky(y), "proj_l2")

        # global FF: (Linear->ReLU)x3 + Linear shortcut (first Linear fused w/ shortcut)
        t = lin(y, "ff_l1sc")                           # [G, 2*emb]
        hf = _relu(t[:, :emb])
        sc = t[:, emb:]
        hf = _relu(lin(hf, "ff_l2"))
        hf = _relu(lin(hf, "ff_l3"))
        g_enc = hf + sc                                 # [G, emb]

        # Cluster: Linear->LeakyReLU->Linear->LeakyReLU + Linear shortcut (fused)
        t = lin(g_enc, "cl_l1sc")                       # [G, half + cluster_emb]
        hc = _leaky(t[:, :half])
        csc = t[:, half:]
        z = _leaky(lin(hc, "cl_l2")) + csc              # [G, cluster_emb]

        # lane-dense output slab [z | g_enc | 0-pad]: pre-zero + sub-range stores
        out_ref[...] = jnp.zeros_like(out_ref)
        out_ref[:, :cluster_emb] = z
        out_ref[:, cluster_emb:cluster_emb + emb] = g_enc

    return kernel


# ------------------------------ parameter setup -------------------------------

def _xavier_uniform(key, out_f, in_f):
    limit = math.sqrt(6.0 / (in_f + out_f))
    return jax.random.uniform(key, (out_f, in_f), jnp.float32, -limit, limit)


def _make_linear(key, in_f, out_f):
    # torch init_emb(): xavier_uniform_ weight, zero bias
    return {"w": _xavier_uniform(key, out_f, in_f),
            "b": jnp.zeros((1, out_f), jnp.float32)}


def init_params(key, num_features, hidden_dim, num_gc_layers, cluster_emb):
    emb = hidden_dim * num_gc_layers
    keys = iter(jax.random.split(key, 64))
    p = {}

    p["gin"] = []
    for i in range(num_gc_layers):
        in_f = num_features if i == 0 else hidden_dim
        p["gin"].append({"l1": _make_linear(next(keys), in_f, hidden_dim),
                         "l2": _make_linear(next(keys), hidden_dim, hidden_dim)})

    p["proj"] = [{"l1": _make_linear(next(keys), emb, emb),
                  "l2": _make_linear(next(keys), emb, emb)} for _ in range(5)]

    def make_ff():
        return {"l1": _make_linear(next(keys), emb, emb),
                "l2": _make_linear(next(keys), emb, emb),
                "l3": _make_linear(next(keys), emb, emb),
                "sc": _make_linear(next(keys), emb, emb)}
    p["global_d"] = make_ff()
    p["local_d"] = make_ff()      # kept for structural parity; l_enc is dead

    half = emb // 2
    p["cluster"] = {"l1": _make_linear(next(keys), emb, half),
                    "l2": _make_linear(next(keys), half, cluster_emb),
                    "sc": _make_linear(next(keys), emb, cluster_emb)}
    return p


def pack_params(params, n_aug=0):
    """Pack ALL weights/biases into two contiguous f32 slabs — done ONCE."""
    num_gc_layers = len(params["gin"])
    hidden_dim = params["gin"][0]["l1"]["w"].shape[0]
    num_features = params["gin"][0]["l1"]["w"].shape[1]
    emb = hidden_dim * num_gc_layers
    cluster_emb = params["cluster"]["sc"]["w"].shape[0]

    gd = params["global_d"]
    cp = params["cluster"]
    pp = params["proj"][n_aug]

    # fused first-Linear + shortcut weights, precomputed here (not per forward)
    fw1s = jnp.concatenate([gd["l1"]["w"], gd["sc"]["w"]], axis=0)
    fb1s = jnp.concatenate([gd["l1"]["b"], gd["sc"]["b"]], axis=1)
    cw1s = jnp.concatenate([cp["l1"]["w"], cp["sc"]["w"]], axis=0)
    cb1s = jnp.concatenate([cp["l1"]["b"], cp["sc"]["b"]], axis=1)

    mats = {}
    for l in range(num_gc_layers):
        mats[f"gin{l}_l1"] = params["gin"][l]["l1"]
        mats[f"gin{l}_l2"] = params["gin"][l]["l2"]
    mats["proj_l1"] = pp["l1"]
    mats["proj_l2"] = pp["l2"]
    mats["ff_l1sc"] = {"w": fw1s, "b": fb1s}
    mats["ff_l2"] = gd["l2"]
    mats["ff_l3"] = gd["l3"]
    mats["cl_l1sc"] = {"w": cw1s, "b": cb1s}
    mats["cl_l2"] = cp["l2"]

    layout, w_rows, b_rows, slab_w = _weight_layout(
        num_features, hidden_dim, num_gc_layers, cluster_emb)

    wslab = np.zeros((w_rows, slab_w), np.float32)
    bslab = np.zeros((b_rows, slab_w), np.float32)
    for name, (row, in_f, out_f, brow) in layout.items():
        w = np.asarray(mats[name]["w"], np.float32)     # torch layout [out, in]
        assert w.shape == (out_f, in_f)
        wslab[row:row + in_f, :out_f] = w.T             # stored [in, out]
        bslab[brow, :out_f] = np.asarray(mats[name]["b"], np.float32).reshape(-1)
    return jnp.asarray(wslab), jnp.asarray(bslab)


# -------------------------------- forward pass --------------------------------

def make_encoder_forward(num_features, hidden_dim, num_gc_layers, cluster_emb):
    emb = hidden_dim * num_gc_layers
    layout, w_rows, b_rows, slab_w = _weight_layout(
        num_features, hidden_dim, num_gc_layers, cluster_emb)
    out_w = ((cluster_emb + emb + 127) // 128) * 128
    kernel = _make_encoder_kernel(layout, num_gc_layers, hidden_dim,
                                  cluster_emb, emb)

    @jax.jit
    def forward(wslab, bslab, x, a_hat, pool_mat):
        """x:[B,N,F], a_hat:[B,N,N] = A+I, pool_mat:[B,G,N].
        Returns (z [B,G,cluster_emb], g_enc [B,G,emb])."""
        B, N, F = x.shape
        G = pool_mat.shape[1]
        out = pl.pallas_call(
            kernel,
            out_shape=jax.ShapeDtypeStruct((B, G, out_w), jnp.float32),
            grid=(B,),
            in_specs=[
                pl.BlockSpec((None, N, N), lambda b: (b, 0, 0)),      # A + I
                pl.BlockSpec((None, N, F), lambda b: (b, 0, 0)),      # node feats
                pl.BlockSpec((None, G, N), lambda b: (b, 0, 0)),      # pooling
                pl.BlockSpec((w_rows, slab_w), lambda b: (0, 0)),     # weight slab
                pl.BlockSpec((b_rows, slab_w), lambda b: (0, 0)),     # bias slab
            ],
            out_specs=pl.BlockSpec((None, G, out_w), lambda b: (b, 0, 0)),
            compiler_params=pltpu.CompilerParams(
                dimension_semantics=("parallel",)),   # shards over 2 TCs on v7x
        )(a_hat, x, pool_mat, wslab, bslab)
        z = out[:, :, :cluster_emb]
        g_enc = out[:, :, cluster_emb:cluster_emb + emb]
        return z, g_enc

    return forward


# -------------------------- pure-JAX reference (check) -------------------------

def _reference_forward(params, x, a_hat, pool, n_aug=0):
    hp = "highest"

    def lin(v, p):
        return jnp.dot(v, p["w"].T, precision=hp) + p["b"]

    h = x
    pooled = []
    for lp in params["gin"]:
        agg = jnp.dot(a_hat, h, precision=hp)
        hh = jax.nn.relu(lin(agg, lp["l1"]))
        hh = jax.nn.relu(lin(hh, lp["l2"]))
        mean = jnp.mean(hh, axis=0, keepdims=True)
        var = jnp.mean((hh - mean) ** 2, axis=0, keepdims=True)
        h = (hh - mean) / jnp.sqrt(var + 1e-5)
        pooled.append(jnp.dot(pool, h, precision=hp))
    y = jnp.concatenate(pooled, axis=1)
    pp = params["proj"][n_aug]
    y = lin(jax.nn.leaky_relu(lin(y, pp["l1"]), 0.01), pp["l2"])
    gd = params["global_d"]
    hf = jax.nn.relu(lin(y, gd["l1"]))
    hf = jax.nn.relu(lin(hf, gd["l2"]))
    hf = jax.nn.relu(lin(hf, gd["l3"]))
    g_enc = hf + lin(y, gd["sc"])
    cp = params["cluster"]
    hc = jax.nn.leaky_relu(lin(g_enc, cp["l1"]), 0.01)
    z = jax.nn.leaky_relu(lin(hc, cp["l2"]), 0.01) + lin(g_enc, cp["sc"])
    return z, g_enc


# ----------------------------------- main --------------------------------------

if __name__ == "__main__":
    NUM_FEATURES = 8
    HIDDEN_DIM = 32
    NUM_GC_LAYERS = 2
    CLUSTER_EMB = 16
    NUM_NODES = 16
    NUM_GRAPHS = 2
    NUM_BATCHES = 4   # stacked "torch forward" batches, one per grid step

    key = jax.random.PRNGKey(0)
    k_param, k_x = jax.random.split(key)

    params = init_params(k_param, NUM_FEATURES, HIDDEN_DIM, NUM_GC_LAYERS,
                         CLUSTER_EMB)
    wslab, bslab = pack_params(params, n_aug=0)           # packed once
    forward = make_encoder_forward(NUM_FEATURES, HIDDEN_DIM, NUM_GC_LAYERS,
                                   CLUSTER_EMB)

    # two graphs of 8 nodes each; bidirectional ring edges inside each graph
    src, dst = [], []
    nodes_per_graph = NUM_NODES // NUM_GRAPHS
    for g in range(NUM_GRAPHS):
        for i in range(nodes_per_graph):
            a_node = g * nodes_per_graph + i
            b_node = g * nodes_per_graph + (i + 1) % nodes_per_graph
            src += [a_node, b_node]
            dst += [b_node, a_node]
    edge_index = jnp.array([src, dst], dtype=jnp.int32)
    batch = jnp.repeat(jnp.arange(NUM_GRAPHS, dtype=jnp.int32), nodes_per_graph)

    a_hat = jnp.zeros((NUM_NODES, NUM_NODES), jnp.float32)
    a_hat = a_hat.at[edge_index[1], edge_index[0]].add(1.0)
    a_hat = a_hat + jnp.eye(NUM_NODES, dtype=jnp.float32)   # (1+eps)*x, eps=0
    pool_mat = jnp.zeros((NUM_GRAPHS, NUM_NODES), jnp.float32)
    pool_mat = pool_mat.at[batch, jnp.arange(NUM_NODES)].set(1.0)

    # stack NUM_BATCHES batches (same structure, different node features)
    a_hat_b = jnp.broadcast_to(a_hat, (NUM_BATCHES, NUM_NODES, NUM_NODES))
    pool_b = jnp.broadcast_to(pool_mat, (NUM_BATCHES, NUM_GRAPHS, NUM_NODES))
    x_b = jax.random.normal(k_x, (NUM_BATCHES, NUM_NODES, NUM_FEATURES),
                            jnp.float32)

    z, g_enc = forward(wslab, bslab, x_b, a_hat_b, pool_b)
    jax.block_until_ready((z, g_enc))

    # correctness vs pure-JAX reference
    z_ref, g_ref = jax.vmap(
        lambda xx, aa, pp: _reference_forward(params, xx, aa, pp, 0)
    )(x_b, a_hat_b, pool_b)

    assert z.shape == (NUM_BATCHES, NUM_GRAPHS, CLUSTER_EMB)
    assert g_enc.shape == (NUM_BATCHES, NUM_GRAPHS, HIDDEN_DIM * NUM_GC_LAYERS)
    assert bool(jnp.all(jnp.isfinite(z))) and bool(jnp.all(jnp.isfinite(g_enc)))
    assert bool(jnp.allclose(z, z_ref, rtol=2e-2, atol=2e-2))
    assert bool(jnp.allclose(g_enc, g_ref, rtol=2e-2, atol=2e-2))
    print("KERNEL_OK")
</pallas_src>

<mosaic_0001>
module attributes {stable_mosaic.version = 11 : i64} {
  func.func @kernel(%arg0: i32, %arg1: memref<1x16x16xf32, #tpu.memory_space<vmem>>, %arg2: memref<1x16x8xf32, #tpu.memory_space<vmem>>, %arg3: memref<1x2x16xf32, #tpu.memory_space<vmem>>, %arg4: memref<520x128xf32, #tpu.memory_space<vmem>>, %arg5: memref<16x128xf32, #tpu.memory_space<vmem>>, %arg6: memref<1x2x128xf32, #tpu.memory_space<vmem>>) attributes {dimension_semantics = [#tpu.dimension_semantics<parallel>], iteration_bounds = array<i64: 4>, scalar_prefetch = 0 : i64, scratch_operands = 0 : i64, tpu.core_type = #tpu.core_type<tc>, window_params = [{transform_indices = @transform_0, window_bounds = array<i64: 1, 16, 16>}, {transform_indices = @transform_1, window_bounds = array<i64: 1, 16, 8>}, {transform_indices = @transform_2, window_bounds = array<i64: 1, 2, 16>}, {pipeline_mode = #tpu.pipeline_mode<synchronous>, transform_indices = @transform_3, window_bounds = array<i64: 520, 128>}, {pipeline_mode = #tpu.pipeline_mode<synchronous>, transform_indices = @transform_4, window_bounds = array<i64: 16, 128>}, {transform_indices = @transform_5, window_bounds = array<i64: 1, 2, 128>}]} {
    %c0 = arith.constant 0 : index
    %c0_0 = arith.constant 0 : index
    %c0_1 = arith.constant 0 : index
    %0 = vector.load %arg1[%c0, %c0_0, %c0_1] : memref<1x16x16xf32, #tpu.memory_space<vmem>>, vector<1x16x16xf32>
    %1 = vector.shape_cast %0 : vector<1x16x16xf32> to vector<16x16xf32>
    %c0_2 = arith.constant 0 : index
    %c0_3 = arith.constant 0 : index
    %c0_4 = arith.constant 0 : index
    %2 = vector.load %arg3[%c0_2, %c0_3, %c0_4] : memref<1x2x16xf32, #tpu.memory_space<vmem>>, vector<1x2x16xf32>
    %3 = vector.shape_cast %2 : vector<1x2x16xf32> to vector<2x16xf32>
    %c0_5 = arith.constant 0 : index
    %c0_6 = arith.constant 0 : index
    %c0_7 = arith.constant 0 : index
    %4 = vector.load %arg2[%c0_5, %c0_6, %c0_7] : memref<1x16x8xf32, #tpu.memory_space<vmem>>, vector<1x16x8xf32>
    %5 = vector.shape_cast %4 : vector<1x16x8xf32> to vector<16x8xf32>
    %cst = arith.constant dense<0.000000e+00> : vector<16x8xf32>
    %6 = tpu.matmul %1, %5, %cst {dimension_numbers = #tpu.dot_dimension_numbers<[1], [0], [0], [1], [0, 0, 1, 1], [], []>} : vector<16x16xf32>, vector<16x8xf32>, vector<16x8xf32> -> vector<16x8xf32>
    %c0_8 = arith.constant 0 : index
    %c0_9 = arith.constant 0 : index
    %7 = vector.load %arg4[%c0_8, %c0_9] : memref<520x128xf32, #tpu.memory_space<vmem>>, vector<8x32xf32>
    %cst_10 = arith.constant dense<0.000000e+00> : vector<16x32xf32>
    %8 = tpu.matmul %6, %7, %cst_10 {dimension_numbers = #tpu.dot_dimension_numbers<[1], [0], [0], [1], [0, 0, 1, 1], [], []>} : vector<16x8xf32>, vector<8x32xf32>, vector<16x32xf32> -> vector<16x32xf32>
    %c0_11 = arith.constant 0 : index
    %c0_12 = arith.constant 0 : index
    %9 = vector.load %arg5[%c0_11, %c0_12] : memref<16x128xf32, #tpu.memory_space<vmem>>, vector<1x32xf32>
    %10 = vector.broadcast %9 : vector<1x32xf32> to vector<16x32xf32>
    %11 = arith.addf %8, %10 : vector<16x32xf32>
    %cst_13 = arith.constant 0.000000e+00 : f32
    %12 = vector.broadcast %cst_13 : f32 to vector<16x32xf32>
    %13 = arith.maximumf %11, %12 : vector<16x32xf32>
    %c8 = arith.constant 8 : index
    %c0_14 = arith.constant 0 : index
    %14 = vector.load %arg4[%c8, %c0_14] : memref<520x128xf32, #tpu.memory_space<vmem>>, vector<32x32xf32>
    %cst_15 = arith.constant dense<0.000000e+00> : vector<16x32xf32>
    %15 = tpu.matmul %13, %14, %cst_15 {dimension_numbers = #tpu.dot_dimension_numbers<[1], [0], [0], [1], [0, 0, 1, 1], [], []>} : vector<16x32xf32>, vector<32x32xf32>, vector<16x32xf32> -> vector<16x32xf32>
    %c1 = arith.constant 1 : index
    %c0_16 = arith.constant 0 : index
    %16 = vector.load %arg5[%c1, %c0_16] : memref<16x128xf32, #tpu.memory_space<vmem>>, vector<1x32xf32>
    %17 = vector.broadcast %16 : vector<1x32xf32> to vector<16x32xf32>
    %18 = arith.addf %15, %17 : vector<16x32xf32>
    %cst_17 = arith.constant 0.000000e+00 : f32
    %19 = vector.broadcast %cst_17 : f32 to vector<16x32xf32>
    %20 = arith.maximumf %18, %19 : vector<16x32xf32>
    %cst_18 = arith.constant dense<0.000000e+00> : vector<32xf32>
    %21 = vector.multi_reduction <add>, %20, %cst_18 [0] : vector<16x32xf32> to vector<32xf32>
    %22 = vector.shape_cast %21 : vector<32xf32> to vector<1x32xf32>
    %cst_19 = arith.constant 1.600000e+01 : f32
    %23 = vector.broadcast %cst_19 : f32 to vector<1x32xf32>
    %24 = arith.divf %22, %23 : vector<1x32xf32>
    %25 = vector.broadcast %24 : vector<1x32xf32> to vector<16x32xf32>
    %26 = arith.subf %20, %25 : vector<16x32xf32>
    %27 = arith.mulf %26, %26 : vector<16x32xf32>
    %cst_20 = arith.constant dense<0.000000e+00> : vector<32xf32>
    %28 = vector.multi_reduction <add>, %27, %cst_20 [0] : vector<16x32xf32> to vector<32xf32>
    %29 = vector.shape_cast %28 : vector<32xf32> to vector<1x32xf32>
    %cst_21 = arith.constant 1.600000e+01 : f32
    %30 = vector.broadcast %cst_21 : f32 to vector<1x32xf32>
    %31 = arith.divf %29, %30 : vector<1x32xf32>
    %cst_22 = arith.constant 9.99999974E-6 : f32
    %32 = vector.broadcast %cst_22 : f32 to vector<1x32xf32>
    %33 = arith.addf %31, %32 : vector<1x32xf32>
    %34 = math.rsqrt %33 : vector<1x32xf32>
    %35 = vector.broadcast %34 : vector<1x32xf32> to vector<16x32xf32>
    %36 = arith.mulf %26, %35 : vector<16x32xf32>
    %cst_23 = arith.constant dense<0.000000e+00> : vector<2x32xf32>
    %37 = tpu.matmul %3, %36, %cst_23 {dimension_numbers = #tpu.dot_dimension_numbers<[1], [0], [0], [1], [0, 0, 1, 1], [], []>} : vector<2x16xf32>, vector<16x32xf32>, vector<2x32xf32> -> vector<2x32xf32>
    %c104 = arith.constant 104 : index
    %c0_24 = arith.constant 0 : index
    %38 = vector.load %arg4[%c104, %c0_24] : memref<520x128xf32, #tpu.memory_space<vmem>>, vector<32x64xf32>
    %cst_25 = arith.constant dense<0.000000e+00> : vector<2x64xf32>
    %39 = tpu.matmul %37, %38, %cst_25 {dimension_numbers = #tpu.dot_dimension_numbers<[1], [0], [0], [1], [0, 0, 1, 1], [], []>} : vector<2x32xf32>, vector<32x64xf32>, vector<2x64xf32> -> vector<2x64xf32>
    %cst_26 = arith.constant dense<0.000000e+00> : vector<16x32xf32>
    %40 = tpu.matmul %1, %36, %cst_26 {dimension_numbers = #tpu.dot_dimension_numbers<[1], [0], [0], [1], [0, 0, 1, 1], [], []>} : vector<16x16xf32>, vector<16x32xf32>, vector<16x32xf32> -> vector<16x32xf32>
    %c40 = arith.constant 40 : index
    %c0_27 = arith.constant 0 : index
    %41 = vector.load %arg4[%c40, %c0_27] : memref<520x128xf32, #tpu.memory_space<vmem>>, vector<32x32xf32>
    %cst_28 = arith.constant dense<0.000000e+00> : vector<16x32xf32>
    %42 = tpu.matmul %40, %41, %cst_28 {dimension_numbers = #tpu.dot_dimension_numbers<[1], [0], [0], [1], [0, 0, 1, 1], [], []>} : vector<16x32xf32>, vector<32x32xf32>, vector<16x32xf32> -> vector<16x32xf32>
    %c2 = arith.constant 2 : index
    %c0_29 = arith.constant 0 : index
    %43 = vector.load %arg5[%c2, %c0_29] : memref<16x128xf32, #tpu.memory_space<vmem>>, vector<1x32xf32>
    %44 = vector.broadcast %43 : vector<1x32xf32> to vector<16x32xf32>
    %45 = arith.addf %42, %44 : vector<16x32xf32>
    %cst_30 = arith.constant 0.000000e+00 : f32
    %46 = vector.broadcast %cst_30 : f32 to vector<16x32xf32>
    %47 = arith.maximumf %45, %46 : vector<16x32xf32>
    %c72 = arith.constant 72 : index
    %c0_31 = arith.constant 0 : index
    %48 = vector.load %arg4[%c72, %c0_31] : memref<520x128xf32, #tpu.memory_space<vmem>>, vector<32x32xf32>
    %cst_32 = arith.constant dense<0.000000e+00> : vector<16x32xf32>
    %49 = tpu.matmul %47, %48, %cst_32 {dimension_numbers = #tpu.dot_dimension_numbers<[1], [0], [0], [1], [0, 0, 1, 1], [], []>} : vector<16x32xf32>, vector<32x32xf32>, vector<16x32xf32> -> vector<16x32xf32>
    %c3 = arith.constant 3 : index
    %c0_33 = arith.constant 0 : index
    %50 = vector.load %arg5[%c3, %c0_33] : memref<16x128xf32, #tpu.memory_space<vmem>>, vector<1x32xf32>
    %51 = vector.broadcast %50 : vector<1x32xf32> to vector<16x32xf32>
    %52 = arith.addf %49, %51 : vector<16x32xf32>
    %cst_34 = arith.constant 0.000000e+00 : f32
    %53 = vector.broadcast %cst_34 : f32 to vector<16x32xf32>
    %54 = arith.maximumf %52, %53 : vector<16x32xf32>
    %cst_35 = arith.constant dense<0.000000e+00> : vector<32xf32>
    %55 = vector.multi_reduction <add>, %54, %cst_35 [0] : vector<16x32xf32> to vector<32xf32>
    %56 = vector.shape_cast %55 : vector<32xf32> to vector<1x32xf32>
    %cst_36 = arith.constant 1.600000e+01 : f32
    %57 = vector.broadcast %cst_36 : f32 to vector<1x32xf32>
    %58 = arith.divf %56, %57 : vector<1x32xf32>
    %59 = vector.broadcast %58 : vector<1x32xf32> to vector<16x32xf32>
    %60 = arith.subf %54, %59 : vector<16x32xf32>
    %61 = arith.mulf %60, %60 : vector<16x32xf32>
    %cst_37 = arith.constant dense<0.000000e+00> : vector<32xf32>
    %62 = vector.multi_reduction <add>, %61, %cst_37 [0] : vector<16x32xf32> to vector<32xf32>
    %63 = vector.shape_cast %62 : vector<32xf32> to vector<1x32xf32>
    %cst_38 = arith.constant 1.600000e+01 : f32
    %64 = vector.broadcast %cst_38 : f32 to vector<1x32xf32>
    %65 = arith.divf %63, %64 : vector<1x32xf32>
    %cst_39 = arith.constant 9.99999974E-6 : f32
    %66 = vector.broadcast %cst_39 : f32 to vector<1x32xf32>
    %67 = arith.addf %65, %66 : vector<1x32xf32>
    %68 = math.rsqrt %67 : vector<1x32xf32>
    %69 = vector.broadcast %68 : vector<1x32xf32> to vector<16x32xf32>
    %70 = arith.mulf %60, %69 : vector<16x32xf32>
    %cst_40 = arith.constant dense<0.000000e+00> : vector<2x32xf32>
    %71 = tpu.matmul %3, %70, %cst_40 {dimension_numbers = #tpu.dot_dimension_numbers<[1], [0], [0], [1], [0, 0, 1, 1], [], []>} : vector<2x16xf32>, vector<16x32xf32>, vector<2x32xf32> -> vector<2x32xf32>
    %c136 = arith.constant 136 : index
    %c0_41 = arith.constant 0 : index
    %72 = vector.load %arg4[%c136, %c0_41] : memref<520x128xf32, #tpu.memory_space<vmem>>, vector<32x64xf32>
    %cst_42 = arith.constant dense<0.000000e+00> : vector<2x64xf32>
    %73 = tpu.matmul %71, %72, %cst_42 {dimension_numbers = #tpu.dot_dimension_numbers<[1], [0], [0], [1], [0, 0, 1, 1], [], []>} : vector<2x32xf32>, vector<32x64xf32>, vector<2x64xf32> -> vector<2x64xf32>
    %74 = arith.addf %39, %73 : vector<2x64xf32>
    %c4 = arith.constant 4 : index
    %c0_43 = arith.constant 0 : index
    %75 = vector.load %arg5[%c4, %c0_43] : memref<16x128xf32, #tpu.memory_space<vmem>>, vector<1x64xf32>
    %76 = vector.broadcast %75 : vector<1x64xf32> to vector<2x64xf32>
    %77 = arith.addf %74, %76 : vector<2x64xf32>
    %cst_44 = arith.constant 0.000000e+00 : f32
    %78 = vector.broadcast %cst_44 : f32 to vector<2x64xf32>
    %79 = arith.cmpf ogt, %77, %78 : vector<2x64xf32>
    %cst_45 = arith.constant 0.00999999977 : f32
    %80 = vector.broadcast %cst_45 : f32 to vector<2x64xf32>
    %81 = arith.mulf %80, %77 : vector<2x64xf32>
    %82 = arith.select %79, %77, %81 : vector<2x64xi1>, vector<2x64xf32>
    %c168 = arith.constant 168 : index
    %c0_46 = arith.constant 0 : index
    %83 = vector.load %arg4[%c168, %c0_46] : memref<520x128xf32, #tpu.memory_space<vmem>>, vector<64x64xf32>
    %cst_47 = arith.constant dense<0.000000e+00> : vector<2x64xf32>
    %84 = tpu.matmul %82, %83, %cst_47 {dimension_numbers = #tpu.dot_dimension_numbers<[1], [0], [0], [1], [0, 0, 1, 1], [], []>} : vector<2x64xf32>, vector<64x64xf32>, vector<2x64xf32> -> vector<2x64xf32>
    %c5 = arith.constant 5 : index
    %c0_48 = arith.constant 0 : index
    %85 = vector.load %arg5[%c5, %c0_48] : memref<16x128xf32, #tpu.memory_space<vmem>>, vector<1x64xf32>
    %86 = vector.broadcast %85 : vector<1x64xf32> to vector<2x64xf32>
    %87 = arith.addf %84, %86 : vector<2x64xf32>
    %c232 = arith.constant 232 : index
    %c0_49 = arith.constant 0 : index
    %88 = vector.load %arg4[%c232, %c0_49] : memref<520x128xf32, #tpu.memory_space<vmem>>, vector<64x128xf32>
    %cst_50 = arith.constant dense<0.000000e+00> : vector<2x128xf32>
    %89 = tpu.matmul %87, %88, %cst_50 {dimension_numbers = #tpu.dot_dimension_numbers<[1], [0], [0], [1], [0, 0, 1, 1], [], []>} : vector<2x64xf32>, vector<64x128xf32>, vector<2x128xf32> -> vector<2x128xf32>
    %c6 = arith.constant 6 : index
    %c0_51 = arith.constant 0 : index
    %90 = vector.load %arg5[%c6, %c0_51] : memref<16x128xf32, #tpu.memory_space<vmem>>, vector<1x128xf32>
    %91 = vector.broadcast %90 : vector<1x128xf32> to vector<2x128xf32>
    %92 = arith.addf %89, %91 : vector<2x128xf32>
    %93 = vector.extract_strided_slice %92 {offsets = [0, 0], sizes = [2, 64], strides = [1, 1]} : vector<2x128xf32> to vector<2x64xf32>
    %cst_52 = arith.constant 0.000000e+00 : f32
    %94 = vector.broadcast %cst_52 : f32 to vector<2x64xf32>
    %95 = arith.maximumf %93, %94 : vector<2x64xf32>
    %96 = vector.extract_strided_slice %92 {offsets = [0, 64], sizes = [2, 64], strides = [1, 1]} : vector<2x128xf32> to vector<2x64xf32>
    %c296 = arith.constant 296 : index
    %c0_53 = arith.constant 0 : index
    %97 = vector.load %arg4[%c296, %c0_53] : memref<520x128xf32, #tpu.memory_space<vmem>>, vector<64x64xf32>
    %cst_54 = arith.constant dense<0.000000e+00> : vector<2x64xf32>
    %98 = tpu.matmul %95, %97, %cst_54 {dimension_numbers = #tpu.dot_dimension_numbers<[1], [0], [0], [1], [0, 0, 1, 1], [], []>} : vector<2x64xf32>, vector<64x64xf32>, vector<2x64xf32> -> vector<2x64xf32>
    %c7 = arith.constant 7 : index
    %c0_55 = arith.constant 0 : index
    %99 = vector.load %arg5[%c7, %c0_55] : memref<16x128xf32, #tpu.memory_space<vmem>>, vector<1x64xf32>
    %100 = vector.broadcast %99 : vector<1x64xf32> to vector<2x64xf32>
    %101 = arith.addf %98, %100 : vector<2x64xf32>
    %cst_56 = arith.constant 0.000000e+00 : f32
    %102 = vector.broadcast %cst_56 : f32 to vector<2x64xf32>
    %103 = arith.maximumf %101, %102 : vector<2x64xf32>
    %c360 = arith.constant 360 : index
    %c0_57 = arith.constant 0 : index
    %104 = vector.load %arg4[%c360, %c0_57] : memref<520x128xf32, #tpu.memory_space<vmem>>, vector<64x64xf32>
    %cst_58 = arith.constant dense<0.000000e+00> : vector<2x64xf32>
    %105 = tpu.matmul %103, %104, %cst_58 {dimension_numbers = #tpu.dot_dimension_numbers<[1], [0], [0], [1], [0, 0, 1, 1], [], []>} : vector<2x64xf32>, vector<64x64xf32>, vector<2x64xf32> -> vector<2x64xf32>
    %c8_59 = arith.constant 8 : index
    %c0_60 = arith.constant 0 : index
    %106 = vector.load %arg5[%c8_59, %c0_60] : memref<16x128xf32, #tpu.memory_space<vmem>>, vector<1x64xf32>
    %107 = vector.broadcast %106 : vector<1x64xf32> to vector<2x64xf32>
    %108 = arith.addf %105, %107 : vector<2x64xf32>
    %cst_61 = arith.constant 0.000000e+00 : f32
    %109 = vector.broadcast %cst_61 : f32 to vector<2x64xf32>
    %110 = arith.maximumf %108, %109 : vector<2x64xf32>
    %111 = arith.addf %110, %96 : vector<2x64xf32>
    %c424 = arith.constant 424 : index
    %c0_62 = arith.constant 0 : index
    %112 = vector.load %arg4[%c424, %c0_62] : memref<520x128xf32, #tpu.memory_space<vmem>>, vector<64x48xf32>
    %cst_63 = arith.constant dense<0.000000e+00> : vector<2x48xf32>
    %113 = tpu.matmul %111, %112, %cst_63 {dimension_numbers = #tpu.dot_dimension_numbers<[1], [0], [0], [1], [0, 0, 1, 1], [], []>} : vector<2x64xf32>, vector<64x48xf32>, vector<2x48xf32> -> vector<2x48xf32>
    %c9 = arith.constant 9 : index
    %c0_64 = arith.constant 0 : index
    %114 = vector.load %arg5[%c9, %c0_64] : memref<16x128xf32, #tpu.memory_space<vmem>>, vector<1x48xf32>
    %115 = vector.broadcast %114 : vector<1x48xf32> to vector<2x48xf32>
    %116 = arith.addf %113, %115 : vector<2x48xf32>
    %117 = vector.extract_strided_slice %116 {offsets = [0, 0], sizes = [2, 32], strides = [1, 1]} : vector<2x48xf32> to vector<2x32xf32>
    %cst_65 = arith.constant 0.000000e+00 : f32
    %118 = vector.broadcast %cst_65 : f32 to vector<2x32xf32>
    %119 = arith.cmpf ogt, %117, %118 : vector<2x32xf32>
    %cst_66 = arith.constant 0.00999999977 : f32
    %120 = vector.broadcast %cst_66 : f32 to vector<2x32xf32>
    %121 = arith.mulf %120, %117 : vector<2x32xf32>
    %122 = arith.select %119, %117, %121 : vector<2x32xi1>, vector<2x32xf32>
    %123 = vector.extract_strided_slice %116 {offsets = [0, 32], sizes = [2, 16], strides = [1, 1]} : vector<2x48xf32> to vector<2x16xf32>
    %c488 = arith.constant 488 : index
    %c0_67 = arith.constant 0 : index
    %124 = vector.load %arg4[%c488, %c0_67] : memref<520x128xf32, #tpu.memory_space<vmem>>, vector<32x16xf32>
    %cst_68 = arith.constant dense<0.000000e+00> : vector<2x16xf32>
    %125 = tpu.matmul %122, %124, %cst_68 {dimension_numbers = #tpu.dot_dimension_numbers<[1], [0], [0], [1], [0, 0, 1, 1], [], []>} : vector<2x32xf32>, vector<32x16xf32>, vector<2x16xf32> -> vector<2x16xf32>
    %c10 = arith.constant 10 : index
    %c0_69 = arith.constant 0 : index
    %126 = vector.load %arg5[%c10, %c0_69] : memref<16x128xf32, #tpu.memory_space<vmem>>, vector<1x16xf32>
    %127 = vector.broadcast %126 : vector<1x16xf32> to vector<2x16xf32>
    %128 = arith.addf %125, %127 : vector<2x16xf32>
    %cst_70 = arith.constant 0.000000e+00 : f32
    %129 = vector.broadcast %cst_70 : f32 to vector<2x16xf32>
    %130 = arith.cmpf ogt, %128, %129 : vector<2x16xf32>
    %cst_71 = arith.constant 0.00999999977 : f32
    %131 = vector.broadcast %cst_71 : f32 to vector<2x16xf32>
    %132 = arith.mulf %131, %128 : vector<2x16xf32>
    %133 = arith.select %130, %128, %132 : vector<2x16xi1>, vector<2x16xf32>
    %134 = arith.addf %133, %123 : vector<2x16xf32>
    %cst_72 = arith.constant 0.000000e+00 : f32
    %135 = vector.broadcast %cst_72 : f32 to vector<2x128xf32>
    %c0_73 = arith.constant 0 : index
    %c0_74 = arith.constant 0 : index
    %c0_75 = arith.constant 0 : index
    %136 = vector.load %arg6[%c0_73, %c0_74, %c0_75] : memref<1x2x128xf32, #tpu.memory_space<vmem>>, vector<1x2x128xf32>
    %137 = vector.shape_cast %136 : vector<1x2x128xf32> to vector<2x128xf32>
    %138 = vector.shape_cast %135 : vector<2x128xf32> to vector<1x2x128xf32>
    tpu.vector_store %arg6[%c0_73, %c0_74, %c0_75], %138 {strides = array<i32>} : memref<1x2x128xf32, #tpu.memory_space<vmem>>, vector<1x2x128xf32>,
    %c0_76 = arith.constant 0 : index
    %c0_77 = arith.constant 0 : index
    %c0_78 = arith.constant 0 : index
    %139 = vector.load %arg6[%c0_76, %c0_77, %c0_78] : memref<1x2x128xf32, #tpu.memory_space<vmem>>, vector<1x2x16xf32>
    %140 = vector.shape_cast %139 : vector<1x2x16xf32> to vector<2x16xf32>
    %141 = vector.shape_cast %134 : vector<2x16xf32> to vector<1x2x16xf32>
    tpu.vector_store %arg6[%c0_76, %c0_77, %c0_78], %141 {strides = array<i32>} : memref<1x2x128xf32, #tpu.memory_space<vmem>>, vector<1x2x16xf32>,
    %c0_79 = arith.constant 0 : index
    %c0_80 = arith.constant 0 : index
    %c16 = arith.constant 16 : index
    %142 = vector.load %arg6[%c0_79, %c0_80, %c16] : memref<1x2x128xf32, #tpu.memory_space<vmem>>, vector<1x2x64xf32>
    %143 = vector.shape_cast %142 : vector<1x2x64xf32> to vector<2x64xf32>
    %144 = vector.shape_cast %111 : vector<2x64xf32> to vector<1x2x64xf32>
    tpu.vector_store %arg6[%c0_79, %c0_80, %c16], %144 {strides = array<i32>} : memref<1x2x128xf32, #tpu.memory_space<vmem>>, vector<1x2x64xf32>,
    return
  }
  func.func @transform_0(%arg0: i32) -> (i32, i32, i32) {
    %c0_i32 = arith.constant 0 : i32
    %c0_i32_0 = arith.constant 0 : i32
    %c0_i32_1 = arith.constant 0 : i32
    return %arg0, %c0_i32, %c0_i32_0 : i32, i32, i32
  }
  func.func @transform_1(%arg0: i32) -> (i32, i32, i32) {
    %c0_i32 = arith.constant 0 : i32
    %c0_i32_0 = arith.constant 0 : i32
    %c0_i32_1 = arith.constant 0 : i32
    return %arg0, %c0_i32, %c0_i32_0 : i32, i32, i32
  }
  func.func @transform_2(%arg0: i32) -> (i32, i32, i32) {
    %c0_i32 = arith.constant 0 : i32
    %c0_i32_0 = arith.constant 0 : i32
    %c0_i32_1 = arith.constant 0 : i32
    return %arg0, %c0_i32, %c0_i32_0 : i32, i32, i32
  }
  func.func @transform_3(%arg0: i32) -> (i32, i32) {
    %c0_i32 = arith.constant 0 : i32
    %c0_i32_0 = arith.constant 0 : i32
    %c0_i32_1 = arith.constant 0 : i32
    return %c0_i32, %c0_i32_0 : i32, i32
  }
  func.func @transform_4(%arg0: i32) -> (i32, i32) {
    %c0_i32 = arith.constant 0 : i32
    %c0_i32_0 = arith.constant 0 : i32
    %c0_i32_1 = arith.constant 0 : i32
    return %c0_i32, %c0_i32_0 : i32, i32
  }
  func.func @transform_5(%arg0: i32) -> (i32, i32, i32) {
    %c0_i32 = arith.constant 0 : i32
    %c0_i32_0 = arith.constant 0 : i32
    %c0_i32_1 = arith.constant 0 : i32
    return %arg0, %c0_i32, %c0_i32_0 : i32, i32, i32
  }
}

</mosaic_0001>

<llo_original>
// kernel: forward.1
$region0: #{forward.1}
  #allocation0 [shape = 'u32[]', space=smem, size = 0x4, offset = 0x4, fixed_abs, tag = 'smem constant byte address 0x4 - core index']
  #allocation1 [shape = 'u32[72,128]{1,0:T(1,128)}', space=vmem, size = 0x9000, scoped, tag = 'internal scratch']
  %s0 = inlined_call_operand.vmem [shape: f32[4,16,16], index: 0, kind: input, shape index: {}]
  %s1 = inlined_call_operand.vmem [shape: f32[4,16,8], index: 1, kind: input, shape index: {}]
  %s2 = inlined_call_operand.vmem [shape: f32[4,2,16], index: 2, kind: input, shape index: {}]
  %s3 = inlined_call_operand.hbm [shape: f32[520,128], index: 3, kind: input, shape index: {}]
  %s4 = inlined_call_operand.vmem [shape: f32[16,128], index: 4, kind: input, shape index: {}]
  %s5 = inlined_call_operand.vmem [shape: f32[4,2,128], index: 5, kind: output, shape index: {}]
  %s6 = sld [smem:[#allocation0]]
  $region57: #{forward.1} parent=0
    _
  %s8 = ssub.s32 1, %s6
  %s9 = scalar_select 0, %s8, %s6
  $region1: #{forward.1} parent=0
    #allocation2 [shape = 'u8[266240]{0}', space=vmem, size = 0x41000, scoped, tag = 'input window, operand 3, single buffered']
    #allocation3 [shape = 's32[2]{0}', space=sflag, size = 0x8, scoped, tag = 'scoped memory for forward.1']
    %10 = vsyncpa [#allocation3], 0
    loop: start=0, step=1, limit=6
    $region2: #{forward.1} parent=1 // loop_pre_header
      _
    $region3: #{forward.1} parent=1 // loop_header
      %s12 = sphi 0, %s16
      %p13 = scmp.ge.s32.totalorder %s12, 6
      %s22 = sphi 0, %s24
      %s25 = sphi 0, %s22
      %s26 = sphi 0, %s25
      %s42 = sphi 0, %s26
      %s48 = sphi 0, %s50
      %s51 = sphi 0, %s48
      %s52 = sphi 0, %s51
      %s68 = sphi 0, %s52
      %s74 = sphi 0, %s76
      %s77 = sphi 0, %s74
      %s78 = sphi 0, %s77
      %s94 = sphi 0, %s78
      %s98 = sphi 0, %s98
      %s100 = sphi 0, %s98
      %s101 = sphi 0, %s100
      %s115 = sphi 0, %s101
      %s119 = sphi 0, %s119
      %s121 = sphi 0, %s119
      %s122 = sphi 0, %s121
      %s136 = sphi 0, %s122
      %s142 = sphi 0, %s144
      %s145 = sphi 0, %s142
      %s146 = sphi 0, %s145
      %s162 = sphi 0, %s146
    $region4: #{forward.1} parent=1 // loop_header_branch
      %15 = sbr.rel (%p13) target = $region8
    $region5: #{forward.1} parent=1 // loop_body
      %s17 = ssub.s32 %s12, 1
      %s18 = ssub.s32 %s12, 2
      %s19 = sadd.s32 %s12, 1
      %s20 = ssub.s32 %s12, %s19
      %p21 = scmp.eq.s32.totalorder %s20, 0
      %s23 = sadd.s32 %s22, 1
      %s24 = scalar_select %p21, %s22, %s23
      %p27 = pneg %p21
      %p28 = scmp.eq.s32.totalorder %s12, 3
      %p29 = por %p27, %p28
      %p30 = scmp.ne.s32.totalorder %s22, %s25
      %p31 = scmp.eq.s32.totalorder %s12, 0
      %p32 = por %p30, %p31
      %p33 = scmp.ne.s32.totalorder %s22, %s25
      %p34 = scmp.eq.s32.totalorder %s17, 3
      %p35 = por %p33, %p34
      %p36 = scmp.ne.s32.totalorder %s25, %s26
      %p37 = scmp.eq.s32.totalorder %s17, 0
      %p38 = por %p36, %p37
      %p39 = scmp.ne.s32.totalorder %s25, %s26
      %p40 = scmp.eq.s32.totalorder %s18, 3
      %p41 = por %p39, %p40
      %p43 = scmp.ne.s32.totalorder %s26, %s42
      %p44 = scmp.eq.s32.totalorder %s18, 0
      %p45 = por %p43, %p44
      %s46 = ssub.s32 %s12, %s19
      %p47 = scmp.eq.s32.totalorder %s46, 0
      %s49 = sadd.s32 %s48, 1
      %s50 = scalar_select %p47, %s48, %s49
      %p53 = pneg %p47
      %p54 = scmp.eq.s32.totalorder %s12, 3
      %p55 = por %p53, %p54
      %p56 = scmp.ne.s32.totalorder %s48, %s51
      %p57 = scmp.eq.s32.totalorder %s12, 0
      %p58 = por %p56, %p57
      %p59 = scmp.ne.s32.totalorder %s48, %s51
      %p60 = scmp.eq.s32.totalorder %s17, 3
      %p61 = por %p59, %p60
      %p62 = scmp.ne.s32.totalorder %s51, %s52
      %p63 = scmp.eq.s32.totalorder %s17, 0
      %p64 = por %p62, %p63
      %p65 = scmp.ne.s32.totalorder %s51, %s52
      %p66 = scmp.eq.s32.totalorder %s18, 3
      %p67 = por %p65, %p66
      %p69 = scmp.ne.s32.totalorder %s52, %s68
      %p70 = scmp.eq.s32.totalorder %s18, 0
      %p71 = por %p69, %p70
      %s72 = ssub.s32 %s12, %s19
      %p73 = scmp.eq.s32.totalorder %s72, 0
      %s75 = sadd.s32 %s74, 1
      %s76 = scalar_select %p73, %s74, %s75
      %p79 = pneg %p73
      %p80 = scmp.eq.s32.totalorder %s12, 3
      %p81 = por %p79, %p80
      %p82 = scmp.ne.s32.totalorder %s74, %s77
      %p83 = scmp.eq.s32.totalorder %s12, 0
      %p84 = por %p82, %p83
      %p85 = scmp.ne.s32.totalorder %s74, %s77
      %p86 = scmp.eq.s32.totalorder %s17, 3
      %p87 = por %p85, %p86
      %p88 = scmp.ne.s32.totalorder %s77, %s78
      %p89 = scmp.eq.s32.totalorder %s17, 0
      %p90 = por %p88, %p89
      %p91 = scmp.ne.s32.totalorder %s77, %s78
      %p92 = scmp.eq.s32.totalorder %s18, 3
      %p93 = por %p91, %p92
      %p95 = scmp.ne.s32.totalorder %s78, %s94
      %p96 = scmp.eq.s32.totalorder %s18, 0
      %p97 = por %p95, %p96
      %s99 = sadd.s32 %s98, 1
      %p102 = scmp.eq.s32.totalorder %s12, 3
      %p103 = scmp.ne.s32.totalorder %s98, %s100
      %p104 = scmp.eq.s32.totalorder %s12, 0
      %p105 = por %p103, %p104
      %p106 = scmp.ne.s32.totalorder %s98, %s100
      %p107 = scmp.eq.s32.totalorder %s17, 3
      %p108 = por %p106, %p107
      %p109 = scmp.ne.s32.totalorder %s100, %s101
      %p110 = scmp.eq.s32.totalorder %s17, 0
      %p111 = por %p109, %p110
      %p112 = scmp.ne.s32.totalorder %s100, %s101
      %p113 = scmp.eq.s32.totalorder %s18, 3
      %p114 = por %p112, %p113
      %p116 = scmp.ne.s32.totalorder %s101, %s115
      %p117 = scmp.eq.s32.totalorder %s18, 0
      %p118 = por %p116, %p117
      %s120 = sadd.s32 %s119, 1
      %p123 = scmp.eq.s32.totalorder %s12, 3
      %p124 = scmp.ne.s32.totalorder %s119, %s121
      %p125 = scmp.eq.s32.totalorder %s12, 0
      %p126 = por %p124, %p125
      %p127 = scmp.ne.s32.totalorder %s119, %s121
      %p128 = scmp.eq.s32.totalorder %s17, 3
      %p129 = por %p127, %p128
      %p130 = scmp.ne.s32.totalorder %s121, %s122
      %p131 = scmp.eq.s32.totalorder %s17, 0
      %p132 = por %p130, %p131
      %p133 = scmp.ne.s32.totalorder %s121, %s122
      %p134 = scmp.eq.s32.totalorder %s18, 3
      %p135 = por %p133, %p134
      %p137 = scmp.ne.s32.totalorder %s122, %s136
      %p138 = scmp.eq.s32.totalorder %s18, 0
      %p139 = por %p137, %p138
      %s140 = ssub.s32 %s12, %s19
      %p141 = scmp.eq.s32.totalorder %s140, 0
      %s143 = sadd.s32 %s142, 1
      %s144 = scalar_select %p141, %s142, %s143
      %p147 = pneg %p141
      %p148 = scmp.eq.s32.totalorder %s12, 3
      %p149 = por %p147, %p148
      %p150 = scmp.ne.s32.totalorder %s142, %s145
      %p151 = scmp.eq.s32.totalorder %s12, 0
      %p152 = por %p150, %p151
      %p153 = scmp.ne.s32.totalorder %s142, %s145
      %p154 = scmp.eq.s32.totalorder %s17, 3
      %p155 = por %p153, %p154
      %p156 = scmp.ne.s32.totalorder %s145, %s146
      %p157 = scmp.eq.s32.totalorder %s17, 0
      %p158 = por %p156, %p157
      %p159 = scmp.ne.s32.totalorder %s145, %s146
      %p160 = scmp.eq.s32.totalorder %s18, 3
      %p161 = por %p159, %p160
      %p163 = scmp.ne.s32.totalorder %s146, %s162
      %p164 = scmp.eq.s32.totalorder %s18, 0
      %p165 = por %p163, %p164
      %p166 = scmp.le.s32.totalorder 1, %s12
      %p167 = scmp.lt.s32.totalorder %s12, 5
      %p168 = pnand %p166, %p167
      %p169 = pneg %p168
      // Predicated region
      $region9: #{forward.1} parent=5 // pred_check
        _
      $region10: #{forward.1} parent=5 // pred_check_branch
        %171 = sbr.rel (%p168) target = $region12
      $region11: #{forward.1} parent=5 // pred_region
        %s172 = ssub.s32 %s12, 1
        // Predicated region
        $region13: #{forward.1} parent=11 // pred_check
          %p173 = pneg %p111
        $region14: #{forward.1} parent=11 // pred_check_branch
          %175 = sbr.rel (%p173) target = $region16
        $region15: #{forward.1} parent=11 // pred_region
          %177 = vsyncadd [#allocation3], 0
          %s178 = sshll.u32 %s3, 4
          %s179 = int_to_ptr.hbm [resolvable:$true] %s178
          %s180 = sshll.u32 [#allocation2], 4
          %s181 = int_to_ptr.vmem [resolvable:$true] %s180
          %186 = dma.hbm_to_vmem [thread:$0]  %s179, 8320, %s181, [#allocation3], 128, 128, 8
        $region16: #{forward.1} parent=11 // pred_fallthru
          _
        // Predicated region
        $region17: #{forward.1} parent=11 // pred_check
          %p187 = pneg %p132
        $region18: #{forward.1} parent=11 // pred_check_branch
          %189 = sbr.rel (%p187) target = $region20
        $region19: #{forward.1} parent=11 // pred_region
          _
        $region20: #{forward.1} parent=11 // pred_fallthru
          _
      $region12: #{forward.1} parent=5 // pred_fallthru
        _
      %p190 = scmp.lt.s32.totalorder %s12, 4
      // Predicated region
      $region21: #{forward.1} parent=5 // pred_check
        %p191 = pneg %p190
      $region22: #{forward.1} parent=5 // pred_check_branch
        %193 = sbr.rel (%p191) target = $region24
      $region23: #{forward.1} parent=5 // pred_region
        // Predicated region
        $region25: #{forward.1} parent=23 // pred_check
          %p194 = pneg %p32
        $region26: #{forward.1} parent=23 // pred_check_branch
          %196 = sbr.rel (%p194) target = $region28
        $region27: #{forward.1} parent=23 // pred_region
          %p197 = scmp.lt.s32.totalorder %s12, 3
          %s198 = scalar_select %p197, %s12, 3
          %s199 = smul.addr %s198, 2
          %s200 = smul.addr %s199, 8
          %s201 = scalar_lea.vmem %s0, %s200
        $region28: #{forward.1} parent=23 // pred_fallthru
          _
        // Predicated region
        $region29: #{forward.1} parent=23 // pred_check
          %p202 = pneg %p58
        $region30: #{forward.1} parent=23 // pred_check_branch
          %204 = sbr.rel (%p202) target = $region32
        $region31: #{forward.1} parent=23 // pred_region
          %p205 = scmp.lt.s32.totalorder %s12, 3
          %s206 = scalar_select %p205, %s12, 3
          %s207 = smul.addr %s206, 2
          %s208 = smul.addr %s207, 8
          %s209 = scalar_lea.vmem %s1, %s208
        $region32: #{forward.1} parent=23 // pred_fallthru
          _
        // Predicated region
        $region33: #{forward.1} parent=23 // pred_check
          %p210 = pneg %p84
        $region34: #{forward.1} parent=23 // pred_check_branch
          %212 = sbr.rel (%p210) target = $region36
        $region35: #{forward.1} parent=23 // pred_region
          %p213 = scmp.lt.s32.totalorder %s12, 3
          %s214 = scalar_select %p213, %s12, 3
          %s215 = smul.addr %s214, 2
          %s216 = scalar_lea.vmem %s2, %s215
        $region36: #{forward.1} parent=23 // pred_fallthru
          _
      $region24: #{forward.1} parent=5 // pred_fallthru
        _
      %p217 = scmp.le.s32.totalorder 1, %s12
      %p218 = scmp.lt.s32.totalorder %s12, 5
      %p219 = pnand %p217, %p218
      %p220 = pneg %p219
      // Predicated region
      $region37: #{forward.1} parent=5 // pred_check
        _
      $region38: #{forward.1} parent=5 // pred_check_branch
        %222 = sbr.rel (%p219) target = $region40
      $region39: #{forward.1} parent=5 // pred_region
        %s223 = ssub.s32 %s12, 1
        // Predicated region
        $region41: #{forward.1} parent=39 // pred_check
          %p224 = pneg %p111
        $region42: #{forward.1} parent=39 // pred_check_branch
          %226 = sbr.rel (%p224) target = $region44
        $region43: #{forward.1} parent=39 // pred_region
          %228 = dma.done [#allocation3], 8320
        $region44: #{forward.1} parent=39 // pred_fallthru
          _
        %p229 = scmp.lt.s32.totalorder %s17, 3
        %s230 = scalar_select %p229, %s17, 3
        %s231 = smul.addr %s230, 2
        %s232 = smul.addr %s231, 8
        %s233 = scalar_lea.vmem %s0, %s232
        %p234 = pneg %p38
        %p235 = pneg %p35
        %p236 = scmp.lt.s32.totalorder %s17, 3
        %s237 = scalar_select %p236, %s17, 3
        %s238 = smul.addr %s237, 2
        %s239 = smul.addr %s238, 8
        %s240 = scalar_lea.vmem %s1, %s239
        %p241 = pneg %p64
        %p242 = pneg %p61
        %p243 = scmp.lt.s32.totalorder %s17, 3
        %s244 = scalar_select %p243, %s17, 3
        %s245 = smul.addr %s244, 2
        %s246 = scalar_lea.vmem %s2, %s245
        %p247 = pneg %p90
        %p248 = pneg %p87
        %p249 = pneg %p111
        %p250 = pneg %p108
        %p251 = pneg %p132
        %p252 = pneg %p129
        %p253 = pneg %p158
        %p254 = pneg %p155
        %p255 = scmp.lt.s32.totalorder %s17, 3
        %s256 = scalar_select %p255, %s17, 3
        %s257 = smul.addr %s256, 2
        %s258 = scalar_lea.vmem %s5, %s257
        %p259 = scmp.lt.s32.totalorder %s17, 3
        %s260 = scalar_select %p259, %s17, 3
        %s261 = smul.addr %s260, 2
        %s262 = smul.addr %s261, 8
        %s263 = scalar_lea.vmem %s0, %s262
        %p264 = scmp.lt.s32.totalorder %s17, 3
        %s265 = scalar_select %p264, %s17, 3
        %s266 = smul.addr %s265, 2
        %s267 = smul.addr %s266, 8
        %s268 = scalar_lea.vmem %s1, %s267
        %p269 = scmp.lt.s32.totalorder %s17, 3
        %s270 = scalar_select %p269, %s17, 3
        %s271 = smul.addr %s270, 2
        %s272 = scalar_lea.vmem %s2, %s271
        %p273 = scmp.lt.s32.totalorder %s17, 3
        %s274 = scalar_select %p273, %s17, 3
        %s275 = smul.addr %s274, 2
        %s276 = scalar_lea.vmem %s5, %s275
        %v277 = vld [vmem:[%s263] sm:$0xff]
        %v278 = vld [vmem:[%s263 + $0x8] sm:$0xff]
        %v279 = vld [vmem:[%s272] sm:$0x3]
        %v280 = vld [vmem:[%s268] sm:$0xff]
        %v281 = vld [vmem:[%s268 + $0x8] sm:$0xff]
        %vm282 = vcmask 130048
        %v284 = vsel %vm282, %v277, 0
        %v287 = vsel %vm282, %v278, 0
        %289 = vmatpush.msra.mxu0 0.0
        %290 = vmatpush.msra.mxu0 0.0
        %291 = vmatpush.msra.mxu0 0.0
        %292 = vmatpush.msra.mxu0 0.0
        %293 = vmatpush.msra.mxu0 0.0
        %294 = vmatpush.msra.mxu0 0.0
        %295 = vmatpush.msra.mxu0 0.0
        %296 = vmatpush.msra.mxu0 0.0
        %297 = vmatpush.msra.mxu0 0.0
        %298 = vmatpush.msra.mxu0 0.0
        %299 = vmatpush.msra.mxu0 0.0
        %300 = vmatpush.msra.mxu0 0.0
        %301 = vmatpush.msra.mxu0 0.0
        %302 = vmatpush.msra.mxu0 0.0
        %303 = vmatpush.msra.mxu0 %v281
        %304 = vmatpush.msra.mxu0 %v280
        %305 = vmatmul.f32.gmra.mxu0 %v284
        %v306 = vpop.f32.mrf.mxu0
        %v307 = vadd.f32 0.0, %v306
        %308 = vmatmul.f32.gmra.mxu0 %v287
        %v309 = vpop.f32.mrf.mxu0
        %v310 = vadd.f32 0.0, %v309
        %311 = vdwg.mxu0
        %v312 = vld [vmem:[#allocation2] sm:$0xff]
        %v313 = vld [vmem:[%s4] sm:$0x1]
        %v314 = vperm.slane %v313, 0
        %vm315 = vcmask 64512
        %v317 = vsel %vm315, %v307, 0
        %v320 = vsel %vm315, %v310, 0
        %322 = vmatpush.msra.mxu0 0.0
        %323 = vmatpush.msra.mxu0 0.0
        %324 = vmatpush.msra.mxu0 0.0
        %325 = vmatpush.msra.mxu0 0.0
        %326 = vmatpush.msra.mxu0 0.0
        %327 = vmatpush.msra.mxu0 0.0
        %328 = vmatpush.msra.mxu0 0.0
        %329 = vmatpush.msra.mxu0 0.0
        %330 = vmatpush.msra.mxu0 0.0
        %331 = vmatpush.msra.mxu0 0.0
        %332 = vmatpush.msra.mxu0 0.0
        %333 = vmatpush.msra.mxu0 0.0
        %334 = vmatpush.msra.mxu0 0.0
        %335 = vmatpush.msra.mxu0 0.0
        %336 = vmatpush.msra.mxu0 0.0
        %337 = vmatpush.msra.mxu0 %v312
        %338 = vmatmul.f32.gmra.mxu0 %v317
        %v339 = vpop.f32.mrf.mxu0
        %v340 = vadd.f32 %v314, %v339
        %341 = vmatmul.f32.gmra.mxu0 %v320
        %v342 = vpop.f32.mrf.mxu0
        %v343 = vadd.f32 %v314, %v342
        %344 = vdwg.mxu0
        %v345 = vmax.f32 %v340, 0.0
        %v346 = vmax.f32 %v343, 0.0
        %v347 = vld [vmem:[#allocation2 + $0x8] sm:$0xff]
        %v348 = vld [vmem:[#allocation2 + $0x10] sm:$0xff]
        %v349 = vld [vmem:[#allocation2 + $0x18] sm:$0xff]
        %v350 = vld [vmem:[#allocation2 + $0x20] sm:$0xff]
        %v351 = vld [vmem:[%s4 + $0x1] sm:$0x1]
        %v352 = vperm.slane %v351, 0
        %vm353 = vcmask 261120
        %v355 = vsel %vm353, %v345, 0
        %v358 = vsel %vm353, %v346, 0
        %360 = vmatpush.msra.mxu0 0.0
        %361 = vmatpush.msra.mxu0 0.0
        %362 = vmatpush.msra.mxu0 0.0
        %363 = vmatpush.msra.mxu0 0.0
        %364 = vmatpush.msra.mxu0 0.0
        %365 = vmatpush.msra.mxu0 0.0
        %366 = vmatpush.msra.mxu0 0.0
        %367 = vmatpush.msra.mxu0 0.0
        %368 = vmatpush.msra.mxu0 0.0
        %369 = vmatpush.msra.mxu0 0.0
        %370 = vmatpush.msra.mxu0 0.0
        %371 = vmatpush.msra.mxu0 0.0
        %372 = vmatpush.msra.mxu0 %v350
        %373 = vmatpush.msra.mxu0 %v349
        %374 = vmatpush.msra.mxu0 %v348
        %375 = vmatpush.msra.mxu0 %v347
        %376 = vmatmul.f32.gmra.mxu0 %v355
        %v377 = vpop.f32.mrf.mxu0
        %v378 = vadd.f32 %v352, %v377
        %379 = vmatmul.f32.gmra.mxu0 %v358
        %v380 = vpop.f32.mrf.mxu0
        %v381 = vadd.f32 %v352, %v380
        %382 = vdwg.mxu0
        %v383 = vmax.f32 %v378, 0.0
        %v384 = vmax.f32 %v381, 0.0
        %v385 = vsel %vm353, %v383, 0.0
        %v386 = vsel %vm353, %v384, 0.0
        %v387 = vadd.f32 %v385, %v386
        %v388 = vrot.slane %v387, 4
        %v389 = vadd.f32 %v387, %v388
        %v390 = vrot.slane %v389, 2
        %v391 = vadd.f32 %v389, %v390
        %v392 = vrot.slane %v391, 1
        %v393 = vadd.f32 %v391, %v392
        %v394 = vrcp.pop 16.0
        %v395 = vmul.f32 16.0, %v394
        %v396 = vsub.f32 1.0, %v395
        %v397 = vmul.f32 %v394, %v396
        %v398 = vadd.f32 %v394, %v397
        %vm399 = vweird.f32 %v394
        %v400 = vsel %vm399, %v394, %v398
        %v401 = vmul.f32 %v393, %v400
        %v402 = vsub.f32 %v383, %v401
        %v403 = vsub.f32 %v384, %v401
        %v404 = vmul.f32 %v402, %v402
        %v405 = vmul.f32 %v403, %v403
        %v406 = vsel %vm353, %v404, 0.0
        %v407 = vsel %vm353, %v405, 0.0
        %v408 = vadd.f32 %v406, %v407
        %v409 = vrot.slane %v408, 4
        %v410 = vadd.f32 %v408, %v409
        %v411 = vrot.slane %v410, 2
        %v412 = vadd.f32 %v410, %v411
        %v413 = vrot.slane %v412, 1
        %v414 = vadd.f32 %v412, %v413
        %v415 = vmul.f32 %v414, %v400
        %v416 = vadd.f32 %v415, 1e-05
        %v417 = vrsqrt.pop %v416
        %v418 = vmul.f32 %v417, %v416
        %v419 = vmul.f32 %v418, %v417
        %v420 = vmul.f32 0.5, %v419
        %v421 = vsub.f32 1.5, %v420
        %v422 = vmul.f32 %v417, %v421
        %vm423 = vweird.f32 %v416
        %vm424 = vweird.f32 %v417
        %vm425 = vmor %vm423, %vm424
        %v426 = vsel %vm425, %v417, %v422
        %v427 = vmul.f32 %v402, %v426
        %v428 = vmul.f32 %v403, %v426
        %v430 = vsel %vm282, %v279, 0
        %432 = vmatpush.msra.mxu0 0.0
        %433 = vmatpush.msra.mxu0 0.0
        %434 = vmatpush.msra.mxu0 0.0
        %435 = vmatpush.msra.mxu0 0.0
        %436 = vmatpush.msra.mxu0 0.0
        %437 = vmatpush.msra.mxu0 0.0
        %438 = vmatpush.msra.mxu0 0.0
        %439 = vmatpush.msra.mxu0 0.0
        %440 = vmatpush.msra.mxu0 0.0
        %441 = vmatpush.msra.mxu0 0.0
        %442 = vmatpush.msra.mxu0 0.0
        %443 = vmatpush.msra.mxu0 0.0
        %444 = vmatpush.msra.mxu0 0.0
        %445 = vmatpush.msra.mxu0 0.0
        %446 = vmatpush.msra.mxu0 %v428
        %447 = vmatpush.msra.mxu0 %v427
        %448 = vmatmul.f32.gmra.mxu0 %v430
        %v449 = vpop.f32.mrf.mxu0
        %v450 = vadd.f32 0.0, %v449
        %451 = vdwg.mxu0
        %v452 = vld [vmem:[#allocation2 + $0x68] sm:$0xff]
        %v453 = vld [vmem:[#allocation2 + $0x70] sm:$0xff]
        %v454 = vld [vmem:[#allocation2 + $0x78] sm:$0xff]
        %v455 = vld [vmem:[#allocation2 + $0x80] sm:$0xff]
        %456 = vmatpush.msra.mxu0 0.0
        %457 = vmatpush.msra.mxu0 0.0
        %458 = vmatpush.msra.mxu0 0.0
        %459 = vmatpush.msra.mxu0 0.0
        %460 = vmatpush.msra.mxu0 0.0
        %461 = vmatpush.msra.mxu0 0.0
        %462 = vmatpush.msra.mxu0 0.0
        %463 = vmatpush.msra.mxu0 0.0
        %464 = vmatpush.msra.mxu0 0.0
        %465 = vmatpush.msra.mxu0 0.0
        %466 = vmatpush.msra.mxu0 0.0
        %467 = vmatpush.msra.mxu0 0.0
        %468 = vmatpush.msra.mxu0 0.0
        %469 = vmatpush.msra.mxu0 0.0
        %470 = vmatpush.msra.mxu0 %v428
        %471 = vmatpush.msra.mxu0 %v427
        %472 = vmatmul.f32.gmra.mxu0 %v284
        %v473 = vpop.f32.mrf.mxu0
        %v474 = vadd.f32 0.0, %v473
        %475 = vmatmul.f32.gmra.mxu0 %v287
        %v476 = vpop.f32.mrf.mxu0
        %v477 = vadd.f32 0.0, %v476
        %478 = vdwg.mxu0
        %v479 = vld [vmem:[#allocation2 + $0x28] sm:$0xff]
        %v480 = vld [vmem:[#allocation2 + $0x30] sm:$0xff]
        %v481 = vld [vmem:[#allocation2 + $0x38] sm:$0xff]
        %v482 = vld [vmem:[#allocation2 + $0x40] sm:$0xff]
        %v483 = vld [vmem:[%s4 + $0x2] sm:$0x1]
        %v484 = vperm.slane %v483, 0
        %v486 = vsel %vm353, %v474, 0
        %v489 = vsel %vm353, %v477, 0
        %491 = vmatpush.msra.mxu0 0.0
        %492 = vmatpush.msra.mxu0 0.0
        %493 = vmatpush.msra.mxu0 0.0
        %494 = vmatpush.msra.mxu0 0.0
        %495 = vmatpush.msra.mxu0 0.0
        %496 = vmatpush.msra.mxu0 0.0
        %497 = vmatpush.msra.mxu0 0.0
        %498 = vmatpush.msra.mxu0 0.0
        %499 = vmatpush.msra.mxu0 0.0
        %500 = vmatpush.msra.mxu0 0.0
        %501 = vmatpush.msra.mxu0 0.0
        %502 = vmatpush.msra.mxu0 0.0
        %503 = vmatpush.msra.mxu0 %v482
        %504 = vmatpush.msra.mxu0 %v481
        %505 = vmatpush.msra.mxu0 %v480
        %506 = vmatpush.msra.mxu0 %v479
        %507 = vmatmul.f32.gmra.mxu0 %v486
        %v508 = vpop.f32.mrf.mxu0
        %v509 = vadd.f32 %v484, %v508
        %510 = vmatmul.f32.gmra.mxu0 %v489
        %v511 = vpop.f32.mrf.mxu0
        %v512 = vadd.f32 %v484, %v511
        %513 = vdwg.mxu0
        %v514 = vmax.f32 %v509, 0.0
        %v515 = vmax.f32 %v512, 0.0
        %v516 = vld [vmem:[#allocation2 + $0x48] sm:$0xff]
        %v517 = vld [vmem:[#allocation2 + $0x50] sm:$0xff]
        %v518 = vld [vmem:[#allocation2 + $0x58] sm:$0xff]
        %v519 = vld [vmem:[#allocation2 + $0x60] sm:$0xff]
        %v520 = vld [vmem:[%s4 + $0x3] sm:$0x1]
        %v521 = vperm.slane %v520, 0
        %v523 = vsel %vm353, %v514, 0
        %v526 = vsel %vm353, %v515, 0
        %528 = vmatpush.msra.mxu0 0.0
        %529 = vmatpush.msra.mxu0 0.0
        %530 = vmatpush.msra.mxu0 0.0
        %531 = vmatpush.msra.mxu0 0.0
        %532 = vmatpush.msra.mxu0 0.0
        %533 = vmatpush.msra.mxu0 0.0
        %534 = vmatpush.msra.mxu0 0.0
        %535 = vmatpush.msra.mxu0 0.0
        %536 = vmatpush.msra.mxu0 0.0
        %537 = vmatpush.msra.mxu0 0.0
        %538 = vmatpush.msra.mxu0 0.0
        %539 = vmatpush.msra.mxu0 0.0
        %540 = vmatpush.msra.mxu0 %v519
        %541 = vmatpush.msra.mxu0 %v518
        %542 = vmatpush.msra.mxu0 %v517
        %543 = vmatpush.msra.mxu0 %v516
        %544 = vmatmul.f32.gmra.mxu0 %v523
        %v545 = vpop.f32.mrf.mxu0
        %v546 = vadd.f32 %v521, %v545
        %547 = vmatmul.f32.gmra.mxu0 %v526
        %v548 = vpop.f32.mrf.mxu0
        %v549 = vadd.f32 %v521, %v548
        %550 = vdwg.mxu0
        %v551 = vmax.f32 %v546, 0.0
        %v552 = vmax.f32 %v549, 0.0
        %v553 = vsel %vm353, %v551, 0.0
        %v554 = vsel %vm353, %v552, 0.0
        %v555 = vadd.f32 %v553, %v554
        %v556 = vrot.slane %v555, 4
        %v557 = vadd.f32 %v555, %v556
        %v558 = vrot.slane %v557, 2
        %v559 = vadd.f32 %v557, %v558
        %v560 = vrot.slane %v559, 1
        %v561 = vadd.f32 %v559, %v560
        %v562 = vmul.f32 %v561, %v400
        %v563 = vsub.f32 %v551, %v562
        %v564 = vsub.f32 %v552, %v562
        %v565 = vmul.f32 %v563, %v563
        %v566 = vmul.f32 %v564, %v564
        %v567 = vsel %vm353, %v565, 0.0
        %v568 = vsel %vm353, %v566, 0.0
        %v569 = vadd.f32 %v567, %v568
        %v570 = vrot.slane %v569, 4
        %v571 = vadd.f32 %v569, %v570
        %v572 = vrot.slane %v571, 2
        %v573 = vadd.f32 %v571, %v572
        %v574 = vrot.slane %v573, 1
        %v575 = vadd.f32 %v573, %v574
        %v576 = vmul.f32 %v575, %v400
        %v577 = vadd.f32 %v576, 1e-05
        %v578 = vrsqrt.pop %v577
        %v579 = vmul.f32 %v578, %v577
        %v580 = vmul.f32 %v579, %v578
        %v581 = vmul.f32 0.5, %v580
        %v582 = vsub.f32 1.5, %v581
        %v583 = vmul.f32 %v578, %v582
        %vm584 = vweird.f32 %v577
        %vm585 = vweird.f32 %v578
        %vm586 = vmor %vm584, %vm585
        %v587 = vsel %vm586, %v578, %v583
        %v588 = vmul.f32 %v563, %v587
        %v589 = vmul.f32 %v564, %v587
        %590 = vmatpush.msra.mxu0 0.0
        %591 = vmatpush.msra.mxu0 0.0
        %592 = vmatpush.msra.mxu0 0.0
        %593 = vmatpush.msra.mxu0 0.0
        %594 = vmatpush.msra.mxu0 0.0
        %595 = vmatpush.msra.mxu0 0.0
        %596 = vmatpush.msra.mxu0 0.0
        %597 = vmatpush.msra.mxu0 0.0
        %598 = vmatpush.msra.mxu0 0.0
        %599 = vmatpush.msra.mxu0 0.0
        %600 = vmatpush.msra.mxu0 0.0
        %601 = vmatpush.msra.mxu0 0.0
        %602 = vmatpush.msra.mxu0 0.0
        %603 = vmatpush.msra.mxu0 0.0
        %604 = vmatpush.msra.mxu0 %v589
        %605 = vmatpush.msra.mxu0 %v588
        %606 = vmatmul.f32.gmra.mxu0 %v430
        %v607 = vpop.f32.mrf.mxu0
        %v608 = vadd.f32 0.0, %v607
        %609 = vdwg.mxu0
        %v610 = vld [vmem:[#allocation2 + $0x88] sm:$0xff]
        %v611 = vld [vmem:[#allocation2 + $0x90] sm:$0xff]
        %v612 = vld [vmem:[#allocation2 + $0x98] sm:$0xff]
        %v613 = vld [vmem:[#allocation2 + $0xa0] sm:$0xff]
        %v615 = vsel %vm353, %v608, 0
        %617 = vmatpush.msra.mxu0 0.0
        %618 = vmatpush.msra.mxu0 0.0
        %619 = vmatpush.msra.mxu0 0.0
        %620 = vmatpush.msra.mxu0 0.0
        %621 = vmatpush.msra.mxu0 0.0
        %622 = vmatpush.msra.mxu0 0.0
        %623 = vmatpush.msra.mxu0 0.0
        %624 = vmatpush.msra.mxu0 0.0
        %625 = vmatpush.msra.mxu0 0.0
        %626 = vmatpush.msra.mxu0 0.0
        %627 = vmatpush.msra.mxu0 0.0
        %628 = vmatpush.msra.mxu0 0.0
        %629 = vmatpush.msra.mxu0 %v613
        %630 = vmatpush.msra.mxu0 %v612
        %631 = vmatpush.msra.mxu0 %v611
        %632 = vmatpush.msra.mxu0 %v610
        %633 = vmatmul.f32.gmra.mxu0 %v615
        %v634 = vpop.f32.mrf.mxu0
        %v635 = vadd.f32 0.0, %v634
        %636 = vdwg.mxu0
        %v638 = vsel %vm353, %v450, 0
        %640 = vmatpush.msra.mxu0 0.0
        %641 = vmatpush.msra.mxu0 0.0
        %642 = vmatpush.msra.mxu0 0.0
        %643 = vmatpush.msra.mxu0 0.0
        %644 = vmatpush.msra.mxu0 0.0
        %645 = vmatpush.msra.mxu0 0.0
        %646 = vmatpush.msra.mxu0 0.0
        %647 = vmatpush.msra.mxu0 0.0
        %648 = vmatpush.msra.mxu0 0.0
        %649 = vmatpush.msra.mxu0 0.0
        %650 = vmatpush.msra.mxu0 0.0
        %651 = vmatpush.msra.mxu0 0.0
        %652 = vmatpush.msra.mxu0 %v455
        %653 = vmatpush.msra.mxu0 %v454
        %654 = vmatpush.msra.mxu0 %v453
        %655 = vmatpush.msra.mxu0 %v452
        %656 = vmatmul.f32.gmra.mxu0 %v638
        %v657 = vpop.f32.mrf.mxu0
        %v658 = vadd.f32 %v635, %v657
        %659 = vdwg.mxu0
        %v660 = vld [vmem:[%s4 + $0x4] sm:$0x1]
        %v661 = vperm.slane %v660, 0
        %v662 = vadd.f32 %v658, %v661
        %vm663 = vcmp.gt.f32.partialorder %v662, 0.0
        %v664 = vmul.f32 %v662, 0.01
        %v665 = vsel %vm663, %v662, %v664
        %v666 = vld [vmem:[#allocation2 + $0xa8] sm:$0xff]
        %v667 = vld [vmem:[#allocation2 + $0xb0] sm:$0xff]
        %v668 = vld [vmem:[#allocation2 + $0xb8] sm:$0xff]
        %v669 = vld [vmem:[#allocation2 + $0xc0] sm:$0xff]
        %v670 = vld [vmem:[#allocation2 + $0xc8] sm:$0xff]
        %v671 = vld [vmem:[#allocation2 + $0xd0] sm:$0xff]
        %v672 = vld [vmem:[#allocation2 + $0xd8] sm:$0xff]
        %v673 = vld [vmem:[#allocation2 + $0xe0] sm:$0xff]
        %v674 = vld [vmem:[%s4 + $0x5] sm:$0x1]
        %v675 = vperm.slane %v674, 0
        %vm676 = vcmask 523264
        %v678 = vsel %vm676, %v665, 0
        %680 = vmatpush.msra.mxu0 0.0
        %681 = vmatpush.msra.mxu0 0.0
        %682 = vmatpush.msra.mxu0 0.0
        %683 = vmatpush.msra.mxu0 0.0
        %684 = vmatpush.msra.mxu0 0.0
        %685 = vmatpush.msra.mxu0 0.0
        %686 = vmatpush.msra.mxu0 0.0
        %687 = vmatpush.msra.mxu0 0.0
        %688 = vmatpush.msra.mxu0 %v673
        %689 = vmatpush.msra.mxu0 %v672
        %690 = vmatpush.msra.mxu0 %v671
        %691 = vmatpush.msra.mxu0 %v670
        %692 = vmatpush.msra.mxu0 %v669
        %693 = vmatpush.msra.mxu0 %v668
        %694 = vmatpush.msra.mxu0 %v667
        %695 = vmatpush.msra.mxu0 %v666
        %696 = vmatmul.f32.gmra.mxu0 %v678
        %v697 = vpop.f32.mrf.mxu0
        %v698 = vadd.f32 %v675, %v697
        %699 = vdwg.mxu0
        %v700 = vld [vmem:[#allocation2 + $0xe8] sm:$0xff]
        %v701 = vld [vmem:[#allocation2 + $0xf0] sm:$0xff]
        %v702 = vld [vmem:[#allocation2 + $0xf8] sm:$0xff]
        %v703 = vld [vmem:[#allocation2 + $0x100] sm:$0xff]
        %v704 = vld [vmem:[#allocation2 + $0x108] sm:$0xff]
        %v705 = vld [vmem:[#allocation2 + $0x110] sm:$0xff]
        %v706 = vld [vmem:[#allocation2 + $0x118] sm:$0xff]
        %v707 = vld [vmem:[#allocation2 + $0x120] sm:$0xff]
        %v708 = vld [vmem:[%s4 + $0x6] sm:$0x1]
        %v709 = vperm.slane %v708, 0
        %v711 = vsel %vm676, %v698, 0
        %713 = vmatpush.msra.mxu0 0.0
        %714 = vmatpush.msra.mxu0 0.0
        %715 = vmatpush.msra.mxu0 0.0
        %716 = vmatpush.msra.mxu0 0.0
        %717 = vmatpush.msra.mxu0 0.0
        %718 = vmatpush.msra.mxu0 0.0
        %719 = vmatpush.msra.mxu0 0.0
        %720 = vmatpush.msra.mxu0 0.0
        %721 = vmatpush.msra.mxu0 %v707
        %722 = vmatpush.msra.mxu0 %v706
        %723 = vmatpush.msra.mxu0 %v705
        %724 = vmatpush.msra.mxu0 %v704
        %725 = vmatpush.msra.mxu0 %v703
        %726 = vmatpush.msra.mxu0 %v702
        %727 = vmatpush.msra.mxu0 %v701
        %728 = vmatpush.msra.mxu0 %v700
        %729 = vmatmul.f32.gmra.mxu0 %v711
        %v730 = vpop.f32.mrf.mxu0
        %v731 = vadd.f32 %v709, %v730
        %732 = vdwg.mxu0
        %v733 = vmax.f32 %v731, 0.0
        %v734 = vld [vmem:[#allocation2 + $0x128] sm:$0xff]
        %v735 = vld [vmem:[#allocation2 + $0x130] sm:$0xff]
        %v736 = vld [vmem:[#allocation2 + $0x138] sm:$0xff]
        %v737 = vld [vmem:[#allocation2 + $0x140] sm:$0xff]
        %v738 = vld [vmem:[#allocation2 + $0x148] sm:$0xff]
        %v739 = vld [vmem:[#allocation2 + $0x150] sm:$0xff]
        %v740 = vld [vmem:[#allocation2 + $0x158] sm:$0xff]
        %v741 = vld [vmem:[#allocation2 + $0x160] sm:$0xff]
        %v742 = vld [vmem:[%s4 + $0x7] sm:$0x1]
        %v743 = vperm.slane %v742, 0
        %v745 = vsel %vm676, %v733, 0
        %747 = vmatpush.msra.mxu0 0.0
        %748 = vmatpush.msra.mxu0 0.0
        %749 = vmatpush.msra.mxu0 0.0
        %750 = vmatpush.msra.mxu0 0.0
        %751 = vmatpush.msra.mxu0 0.0
        %752 = vmatpush.msra.mxu0 0.0
        %753 = vmatpush.msra.mxu0 0.0
        %754 = vmatpush.msra.mxu0 0.0
        %755 = vmatpush.msra.mxu0 %v741
        %756 = vmatpush.msra.mxu0 %v740
        %757 = vmatpush.msra.mxu0 %v739
        %758 = vmatpush.msra.mxu0 %v738
        %759 = vmatpush.msra.mxu0 %v737
        %760 = vmatpush.msra.mxu0 %v736
        %761 = vmatpush.msra.mxu0 %v735
        %762 = vmatpush.msra.mxu0 %v734
        %763 = vmatmul.f32.gmra.mxu0 %v745
        %v764 = vpop.f32.mrf.mxu0
        %v765 = vadd.f32 %v743, %v764
        %766 = vdwg.mxu0
        %v767 = vmax.f32 %v765, 0.0
        %v768 = vld [vmem:[#allocation2 + $0x168] sm:$0xff]
        %v769 = vld [vmem:[#allocation2 + $0x170] sm:$0xff]
        %v770 = vld [vmem:[#allocation2 + $0x178] sm:$0xff]
        %v771 = vld [vmem:[#allocation2 + $0x180] sm:$0xff]
        %v772 = vld [vmem:[#allocation2 + $0x188] sm:$0xff]
        %v773 = vld [vmem:[#allocation2 + $0x190] sm:$0xff]
        %v774 = vld [vmem:[#allocation2 + $0x198] sm:$0xff]
        %v775 = vld [vmem:[#allocation2 + $0x1a0] sm:$0xff]
        %v776 = vld [vmem:[%s4 + $0x8] sm:$0x1]
        %v777 = vperm.slane %v776, 0
        %v779 = vsel %vm676, %v767, 0
        %781 = vmatpush.msra.mxu0 0.0
        %782 = vmatpush.msra.mxu0 0.0
        %783 = vmatpush.msra.mxu0 0.0
        %784 = vmatpush.msra.mxu0 0.0
        %785 = vmatpush.msra.mxu0 0.0
        %786 = vmatpush.msra.mxu0 0.0
        %787 = vmatpush.msra.mxu0 0.0
        %788 = vmatpush.msra.mxu0 0.0
        %789 = vmatpush.msra.mxu0 %v775
        %790 = vmatpush.msra.mxu0 %v774
        %791 = vmatpush.msra.mxu0 %v773
        %792 = vmatpush.msra.mxu0 %v772
        %793 = vmatpush.msra.mxu0 %v771
        %794 = vmatpush.msra.mxu0 %v770
        %795 = vmatpush.msra.mxu0 %v769
        %796 = vmatpush.msra.mxu0 %v768
        %797 = vmatmul.f32.gmra.mxu0 %v779
        %v798 = vpop.f32.mrf.mxu0
        %v799 = vadd.f32 %v777, %v798
        %800 = vdwg.mxu0
        %v801 = vmax.f32 %v799, 0.0
        %803 = vrot.lane.b32.xlu0 %v731, 64
        %v804 = vpop.permute.xlu0 %803
        %v806 = vadd.f32 %v801, %v804
        %v807 = vld [vmem:[#allocation2 + $0x1a8] sm:$0xff]
        %v808 = vld [vmem:[#allocation2 + $0x1b0] sm:$0xff]
        %v809 = vld [vmem:[#allocation2 + $0x1b8] sm:$0xff]
        %v810 = vld [vmem:[#allocation2 + $0x1c0] sm:$0xff]
        %v811 = vld [vmem:[#allocation2 + $0x1c8] sm:$0xff]
        %v812 = vld [vmem:[#allocation2 + $0x1d0] sm:$0xff]
        %v813 = vld [vmem:[#allocation2 + $0x1d8] sm:$0xff]
        %v814 = vld [vmem:[#allocation2 + $0x1e0] sm:$0xff]
        %v815 = vld [vmem:[%s4 + $0x9] sm:$0x1]
        %v816 = vperm.slane %v815, 0
        %v818 = vsel %vm676, %v806, 0
        %820 = vmatpush.msra.mxu0 0.0
        %821 = vmatpush.msra.mxu0 0.0
        %822 = vmatpush.msra.mxu0 0.0
        %823 = vmatpush.msra.mxu0 0.0
        %824 = vmatpush.msra.mxu0 0.0
        %825 = vmatpush.msra.mxu0 0.0
        %826 = vmatpush.msra.mxu0 0.0
        %827 = vmatpush.msra.mxu0 0.0
        %828 = vmatpush.msra.mxu0 %v814
        %829 = vmatpush.msra.mxu0 %v813
        %830 = vmatpush.msra.mxu0 %v812
        %831 = vmatpush.msra.mxu0 %v811
        %832 = vmatpush.msra.mxu0 %v810
        %833 = vmatpush.msra.mxu0 %v809
        %834 = vmatpush.msra.mxu0 %v808
        %835 = vmatpush.msra.mxu0 %v807
        %836 = vmatmul.f32.gmra.mxu0 %v818
        %v837 = vpop.f32.mrf.mxu0
        %v838 = vadd.f32 %v816, %v837
        %839 = vdwg.mxu0
        %vm840 = vcmp.gt.f32.partialorder %v838, 0.0
        %v841 = vmul.f32 %v838, 0.01
        %v842 = vsel %vm840, %v838, %v841
        %v843 = vld [vmem:[#allocation2 + $0x1e8] sm:$0xff]
        %v844 = vld [vmem:[#allocation2 + $0x1f0] sm:$0xff]
        %v845 = vld [vmem:[#allocation2 + $0x1f8] sm:$0xff]
        %v846 = vld [vmem:[#allocation2 + $0x200] sm:$0xff]
        %v847 = vld [vmem:[%s4 + $0xa] sm:$0x1]
        %v848 = vperm.slane %v847, 0
        %v850 = vsel %vm353, %v842, 0
        %852 = vmatpush.msra.mxu0 0.0
        %853 = vmatpush.msra.mxu0 0.0
        %854 = vmatpush.msra.mxu0 0.0
        %855 = vmatpush.msra.mxu0 0.0
        %856 = vmatpush.msra.mxu0 0.0
        %857 = vmatpush.msra.mxu0 0.0
        %858 = vmatpush.msra.mxu0 0.0
        %859 = vmatpush.msra.mxu0 0.0
        %860 = vmatpush.msra.mxu0 0.0
        %861 = vmatpush.msra.mxu0 0.0
        %862 = vmatpush.msra.mxu0 0.0
        %863 = vmatpush.msra.mxu0 0.0
        %864 = vmatpush.msra.mxu0 %v846
        %865 = vmatpush.msra.mxu0 %v845
        %866 = vmatpush.msra.mxu0 %v844
        %867 = vmatpush.msra.mxu0 %v843
        %868 = vmatmul.f32.gmra.mxu0 %v850
        %v869 = vpop.f32.mrf.mxu0
        %v870 = vadd.f32 %v848, %v869
        %871 = vdwg.mxu0
        %vm872 = vcmp.gt.f32.partialorder %v870, 0.0
        %v873 = vmul.f32 %v870, 0.01
        %v874 = vsel %vm872, %v870, %v873
        %876 = vrot.lane.b32.xlu0 %v838, 96
        %v877 = vpop.permute.xlu0 %876
        %v879 = vadd.f32 %v874, %v877
        %880 = vst [vmem:[%s276] sm:$0x3] 0.0
        %vm881 = vcmask 123904
        %882 = vst.msk [vmem:[%s276] sm:$0x3] %vm881, %v879
        %883 = vrot.lane.b32.xlu0 %v806, 16
        %v884 = vpop.permute.xlu0 %883
        %vm886 = vcmask 648320
        %887 = vst.msk [vmem:[%s276] sm:$0x3] %vm886, %v884
        %p888 = scmp.lt.s32.totalorder %s17, 3
        %s889 = scalar_select %p888, %s17, 3
        %s890 = smul.addr %s889, 2
        %s891 = scalar_lea.vmem %s5, %s890
        // Predicated region
        $region45: #{forward.1} parent=39 // pred_check
          %p892 = pneg %p155
        $region46: #{forward.1} parent=39 // pred_check_branch
          %894 = sbr.rel (%p892) target = $region48
        $region47: #{forward.1} parent=39 // pred_region
          _
        $region48: #{forward.1} parent=39 // pred_fallthru
          _
      $region40: #{forward.1} parent=5 // pred_fallthru
        _
      %p895 = scmp.le.s32.totalorder 2, %s12
      // Predicated region
      $region49: #{forward.1} parent=5 // pred_check
        %p896 = pneg %p895
      $region50: #{forward.1} parent=5 // pred_check_branch
        %898 = sbr.rel (%p896) target = $region52
      $region51: #{forward.1} parent=5 // pred_region
        %s899 = ssub.s32 %s12, 2
        // Predicated region
        $region53: #{forward.1} parent=51 // pred_check
          %p900 = pneg %p161
        $region54: #{forward.1} parent=51 // pred_check_branch
          %902 = sbr.rel (%p900) target = $region56
        $region55: #{forward.1} parent=51 // pred_region
          %p903 = scmp.lt.s32.totalorder %s18, 3
          %s904 = scalar_select %p903, %s18, 3
          %s905 = smul.addr %s904, 2
          %s906 = scalar_lea.vmem %s5, %s905
        $region56: #{forward.1} parent=51 // pred_fallthru
          _
      $region52: #{forward.1} parent=5 // pred_fallthru
        _
    $region6: #{forward.1} parent=1 // loop_footer
      %s16 = sadd.s32 1, %s12
    $region7: #{forward.1} parent=1 // loop_footer_branch
      %11 = sbr.rel target = $region3
    $region8: #{forward.1} parent=1 // loop_exit
      _
    %907 = vsyncpa [#allocation3], 1
    %s908 = scalar_lea.sflag [#allocation3], 1
    %909 = vsyncpa %s908, 1

</llo_original>
